<compile_context>
chip_gen: v7x
topology: tpu7x:2x2x1
jax: 0.10.0
libtpu: 0.0.40
codegen_flags: <defaults>
</compile_context>

<pallas_src>
import functools

import jax
import jax.numpy as jnp
from jax.experimental import pallas as pl
from jax.experimental.pallas import tpu as pltpu


def _round_up(n, m):
    return ((n + m - 1) // m) * m


# --------------------------------------------------------------------------
# Kernel
# --------------------------------------------------------------------------
def projection_head_kernel(x_ref, w0_ref, c0_ref, w1_ref, c1_ref, w2_ref,
                           o_ref, *, output_sigmoid: bool):
    # Layer 0: Linear + folded BatchNorm + ReLU (bf16 MXU operands, f32 acc).
    x = x_ref[...].astype(jnp.bfloat16)
    h = jnp.dot(x, w0_ref[...], preferred_element_type=jnp.float32)
    h = jnp.maximum(h + c0_ref[...], 0.0)

    # Layer 1: Linear + folded BatchNorm + ReLU.
    h = jnp.dot(h.astype(jnp.bfloat16), w1_ref[...],
                preferred_element_type=jnp.float32)
    h = jnp.maximum(h + c1_ref[...], 0.0)

    # Output layer: Linear(body, head, bias=False), exact head width.
    out = jnp.dot(h.astype(jnp.bfloat16), w2_ref[...],
                  preferred_element_type=jnp.float32)
    if output_sigmoid:
        out = jax.nn.sigmoid(out)
    o_ref[...] = out.astype(o_ref.dtype)


# --------------------------------------------------------------------------
# One-time parameter preparation (hoisted out of the per-call hot path).
# --------------------------------------------------------------------------
def prepare_params(params):
    """Fold BatchNorm (eval) scale/shift and linear bias into the weights.

    (x @ w + b) * s + t  ==  x @ (w * s) + (b * s + t)
    """
    w0, b0, s0, t0, w1, b1, s1, t1, w2 = params
    w0f = (w0 * s0).astype(jnp.bfloat16)
    c0 = (b0 * s0 + t0).astype(jnp.float32)
    w1f = (w1 * s1).astype(jnp.bfloat16)
    c1 = (b1 * s1 + t1).astype(jnp.float32)
    w2f = w2.astype(jnp.bfloat16)
    return w0f, c0, w1f, c1, w2f


def _choose_tile(B, block_b):
    """Batch tile: full batch for small B, else a multiple of 128 giving a
    grid of >=2 (ideally >=4) steps so v7x's 2 TensorCores both pipeline."""
    if B <= 128:
        return B                       # block dim == full array dim -> legal
    tb = min(block_b, _round_up(pl.cdiv(B, 4), 128))
    return max(128, _round_up(tb, 128))


# --------------------------------------------------------------------------
# Hot-path wrapper
# --------------------------------------------------------------------------
def projection_head(x, folded_params, *, output_sigmoid: bool = False,
                    block_b: int = 512):
    """Fused forward pass. x: (B, input_features) float32."""
    w0f, c0, w1f, c1, w2f = folded_params
    B, in_features = x.shape
    body = w0f.shape[1]
    head = w2f.shape[1]

    tb = _choose_tile(B, block_b)
    grid = (pl.cdiv(B, tb),)           # ragged last block handled by Pallas

    kernel = functools.partial(projection_head_kernel,
                               output_sigmoid=output_sigmoid)

    def resident(shape):  # constant index_map -> stays in VMEM across the grid
        return pl.BlockSpec(shape, lambda i: (0, 0))

    flops = 2 * B * (in_features * body + body * body + body * head)
    transcendentals = B * head if output_sigmoid else 0
    bytes_accessed = (4 * B * (in_features + head)
                      + 2 * (w0f.size + w1f.size + w2f.size)
                      + 4 * (c0.size + c1.size))

    out = pl.pallas_call(
        kernel,
        out_shape=jax.ShapeDtypeStruct((B, head), x.dtype),
        grid=grid,
        in_specs=[pl.BlockSpec((tb, in_features), lambda i: (i, 0)),
                  resident(w0f.shape), resident(c0.shape),
                  resident(w1f.shape), resident(c1.shape),
                  resident(w2f.shape)],
        out_specs=pl.BlockSpec((tb, head), lambda i: (i, 0)),
        compiler_params=pltpu.CompilerParams(
            dimension_semantics=("parallel",)),
        cost_estimate=pl.CostEstimate(flops=flops,
                                      transcendentals=transcendentals,
                                      bytes_accessed=bytes_accessed),
    )(x, w0f, c0, w1f, c1, w2f)

    return out


# --------------------------------------------------------------------------
# Reference + deterministic init
# --------------------------------------------------------------------------
def init_params(key, input_features, projection_body, projection_head_size,
                eps=1e-5):
    """Deterministic parameter init; BN (eval mode) expressed as scale/shift."""
    ks = jax.random.split(key, 14)

    def linear(kw, kb, fan_in, fan_out, bias=True):
        bound = 1.0 / jnp.sqrt(fan_in)
        w = jax.random.uniform(kw, (fan_in, fan_out), jnp.float32, -bound, bound)
        b = (jax.random.uniform(kb, (1, fan_out), jnp.float32, -bound, bound)
             if bias else jnp.zeros((1, fan_out), jnp.float32))
        return w, b

    def bn_fold(kg, kb, km, kv, num_features):
        gamma = 1.0 + 0.1 * jax.random.normal(kg, (1, num_features), jnp.float32)
        beta = 0.1 * jax.random.normal(kb, (1, num_features), jnp.float32)
        mean = 0.1 * jax.random.normal(km, (1, num_features), jnp.float32)
        var = jnp.abs(jax.random.normal(kv, (1, num_features), jnp.float32)) + 0.5
        scale = gamma / jnp.sqrt(var + eps)
        shift = beta - mean * scale
        return scale, shift

    w0, b0 = linear(ks[0], ks[1], input_features, projection_body)
    s0, t0 = bn_fold(ks[2], ks[3], ks[4], ks[5], projection_body)
    w1, b1 = linear(ks[6], ks[7], projection_body, projection_body)
    s1, t1 = bn_fold(ks[8], ks[9], ks[10], ks[11], projection_body)
    # Output layer: bias=False (output_bias default).
    w2, _ = linear(ks[12], ks[13], projection_body, projection_head_size,
                   bias=False)
    return (w0, b0, s0, t0, w1, b1, s1, t1, w2)


def reference_forward(x, params, output_sigmoid=False):
    w0, b0, s0, t0, w1, b1, s1, t1, w2 = params
    h = jnp.maximum((x @ w0 + b0) * s0 + t0, 0.0)
    h = jnp.maximum((h @ w1 + b1) * s1 + t1, 0.0)
    out = h @ w2
    if output_sigmoid:
        out = jax.nn.sigmoid(out)
    return out


if __name__ == "__main__":
    batch = 256                  # > 128 so the batch-tiled grid (>=2 steps) runs
    input_features = 32
    projection_body = 64
    projection_head_size = 16

    key = jax.random.PRNGKey(0)
    kx, kp = jax.random.split(key)
    x = jax.random.normal(kx, (batch, input_features), jnp.float32)
    params = init_params(kp, input_features, projection_body,
                         projection_head_size)

    folded = prepare_params(params)          # one-time BN/bias fold (hoisted)
    out = projection_head(x, folded, output_sigmoid=False)
    out = jax.block_until_ready(out)

    ref = reference_forward(x, params)
    assert out.shape == (batch, projection_head_size)
    # bf16 MXU operands (f32 accumulate) -> slightly looser tolerance vs f32 ref.
    assert jnp.allclose(out, ref, atol=5e-2, rtol=5e-2), \
        float(jnp.max(jnp.abs(out - ref)))
    print("KERNEL_OK")
</pallas_src>

<mosaic_0001>
module attributes {stable_mosaic.version = 11 : i64} {
  func.func @projection_head_kernel(%arg0: i32, %arg1: memref<128x32xf32, #tpu.memory_space<vmem>>, %arg2: memref<32x64xbf16, #tpu.memory_space<vmem>>, %arg3: memref<1x64xf32, #tpu.memory_space<vmem>>, %arg4: memref<64x64xbf16, #tpu.memory_space<vmem>>, %arg5: memref<1x64xf32, #tpu.memory_space<vmem>>, %arg6: memref<64x16xbf16, #tpu.memory_space<vmem>>, %arg7: memref<128x16xf32, #tpu.memory_space<vmem>>) attributes {dimension_semantics = [#tpu.dimension_semantics<parallel>], iteration_bounds = array<i64: 2>, scalar_prefetch = 0 : i64, scratch_operands = 0 : i64, tpu.core_type = #tpu.core_type<tc>, window_params = [{transform_indices = @transform_0, window_bounds = array<i64: 128, 32>}, {pipeline_mode = #tpu.pipeline_mode<synchronous>, transform_indices = @transform_1, window_bounds = array<i64: 32, 64>}, {pipeline_mode = #tpu.pipeline_mode<synchronous>, transform_indices = @transform_2, window_bounds = array<i64: 1, 64>}, {pipeline_mode = #tpu.pipeline_mode<synchronous>, transform_indices = @transform_3, window_bounds = array<i64: 64, 64>}, {pipeline_mode = #tpu.pipeline_mode<synchronous>, transform_indices = @transform_4, window_bounds = array<i64: 1, 64>}, {pipeline_mode = #tpu.pipeline_mode<synchronous>, transform_indices = @transform_5, window_bounds = array<i64: 64, 16>}, {transform_indices = @transform_6, window_bounds = array<i64: 128, 16>}]} {
    %c0 = arith.constant 0 : index
    %c0_0 = arith.constant 0 : index
    %0 = vector.load %arg1[%c0, %c0_0] : memref<128x32xf32, #tpu.memory_space<vmem>>, vector<128x32xf32>
    %1 = arith.truncf %0 : vector<128x32xf32> to vector<128x32xbf16>
    %c0_1 = arith.constant 0 : index
    %c0_2 = arith.constant 0 : index
    %2 = vector.load %arg2[%c0_1, %c0_2] : memref<32x64xbf16, #tpu.memory_space<vmem>>, vector<32x64xbf16>
    %cst = arith.constant dense<0.000000e+00> : vector<128x64xf32>
    %3 = tpu.matmul %1, %2, %cst {dimension_numbers = #tpu.dot_dimension_numbers<[1], [0], [0], [1], [0, 0, 1, 1], [], []>} : vector<128x32xbf16>, vector<32x64xbf16>, vector<128x64xf32> -> vector<128x64xf32>
    %c0_3 = arith.constant 0 : index
    %c0_4 = arith.constant 0 : index
    %4 = vector.load %arg3[%c0_3, %c0_4] : memref<1x64xf32, #tpu.memory_space<vmem>>, vector<1x64xf32>
    %5 = vector.broadcast %4 : vector<1x64xf32> to vector<128x64xf32>
    %6 = arith.addf %3, %5 : vector<128x64xf32>
    %cst_5 = arith.constant 0.000000e+00 : f32
    %7 = vector.broadcast %cst_5 : f32 to vector<128x64xf32>
    %8 = arith.maximumf %6, %7 : vector<128x64xf32>
    %9 = arith.truncf %8 : vector<128x64xf32> to vector<128x64xbf16>
    %c0_6 = arith.constant 0 : index
    %c0_7 = arith.constant 0 : index
    %10 = vector.load %arg4[%c0_6, %c0_7] : memref<64x64xbf16, #tpu.memory_space<vmem>>, vector<64x64xbf16>
    %cst_8 = arith.constant dense<0.000000e+00> : vector<128x64xf32>
    %11 = tpu.matmul %9, %10, %cst_8 {dimension_numbers = #tpu.dot_dimension_numbers<[1], [0], [0], [1], [0, 0, 1, 1], [], []>} : vector<128x64xbf16>, vector<64x64xbf16>, vector<128x64xf32> -> vector<128x64xf32>
    %c0_9 = arith.constant 0 : index
    %c0_10 = arith.constant 0 : index
    %12 = vector.load %arg5[%c0_9, %c0_10] : memref<1x64xf32, #tpu.memory_space<vmem>>, vector<1x64xf32>
    %13 = vector.broadcast %12 : vector<1x64xf32> to vector<128x64xf32>
    %14 = arith.addf %11, %13 : vector<128x64xf32>
    %cst_11 = arith.constant 0.000000e+00 : f32
    %15 = vector.broadcast %cst_11 : f32 to vector<128x64xf32>
    %16 = arith.maximumf %14, %15 : vector<128x64xf32>
    %17 = arith.truncf %16 : vector<128x64xf32> to vector<128x64xbf16>
    %c0_12 = arith.constant 0 : index
    %c0_13 = arith.constant 0 : index
    %18 = vector.load %arg6[%c0_12, %c0_13] : memref<64x16xbf16, #tpu.memory_space<vmem>>, vector<64x16xbf16>
    %cst_14 = arith.constant dense<0.000000e+00> : vector<128x16xf32>
    %19 = tpu.matmul %17, %18, %cst_14 {dimension_numbers = #tpu.dot_dimension_numbers<[1], [0], [0], [1], [0, 0, 1, 1], [], []>} : vector<128x64xbf16>, vector<64x16xbf16>, vector<128x16xf32> -> vector<128x16xf32>
    %c0_15 = arith.constant 0 : index
    %c0_16 = arith.constant 0 : index
    %20 = vector.load %arg7[%c0_15, %c0_16] : memref<128x16xf32, #tpu.memory_space<vmem>>, vector<128x16xf32>
    tpu.vector_store %arg7[%c0_15, %c0_16], %19 {strides = array<i32>} : memref<128x16xf32, #tpu.memory_space<vmem>>, vector<128x16xf32>,
    return
  }
  func.func @transform_0(%arg0: i32) -> (i32, i32) {
    %c0_i32 = arith.constant 0 : i32
    %c0_i32_0 = arith.constant 0 : i32
    return %arg0, %c0_i32 : i32, i32
  }
  func.func @transform_1(%arg0: i32) -> (i32, i32) {
    %c0_i32 = arith.constant 0 : i32
    %c0_i32_0 = arith.constant 0 : i32
    %c0_i32_1 = arith.constant 0 : i32
    return %c0_i32, %c0_i32_0 : i32, i32
  }
  func.func @transform_2(%arg0: i32) -> (i32, i32) {
    %c0_i32 = arith.constant 0 : i32
    %c0_i32_0 = arith.constant 0 : i32
    %c0_i32_1 = arith.constant 0 : i32
    return %c0_i32, %c0_i32_0 : i32, i32
  }
  func.func @transform_3(%arg0: i32) -> (i32, i32) {
    %c0_i32 = arith.constant 0 : i32
    %c0_i32_0 = arith.constant 0 : i32
    %c0_i32_1 = arith.constant 0 : i32
    return %c0_i32, %c0_i32_0 : i32, i32
  }
  func.func @transform_4(%arg0: i32) -> (i32, i32) {
    %c0_i32 = arith.constant 0 : i32
    %c0_i32_0 = arith.constant 0 : i32
    %c0_i32_1 = arith.constant 0 : i32
    return %c0_i32, %c0_i32_0 : i32, i32
  }
  func.func @transform_5(%arg0: i32) -> (i32, i32) {
    %c0_i32 = arith.constant 0 : i32
    %c0_i32_0 = arith.constant 0 : i32
    %c0_i32_1 = arith.constant 0 : i32
    return %c0_i32, %c0_i32_0 : i32, i32
  }
  func.func @transform_6(%arg0: i32) -> (i32, i32) {
    %c0_i32 = arith.constant 0 : i32
    %c0_i32_0 = arith.constant 0 : i32
    return %arg0, %c0_i32 : i32, i32
  }
}

</mosaic_0001>

<llo_original>
// kernel: tpu_custom_call.1
$region0: #{tpu_custom_call.1}
  #allocation0 [shape = 'u32[]', space=smem, size = 0x4, offset = 0x4, fixed_abs, tag = 'smem constant byte address 0x4 - core index']
  #allocation1 [shape = 'u32[144,128]{1,0:T(1,128)}', space=vmem, size = 0x12000, scoped, tag = 'internal scratch']
  %s0 = inlined_call_operand.vmem [shape: f32[256,32], index: 0, kind: input, shape index: {}]
  %s1 = inlined_call_operand.vmem [shape: bf16[32,64], index: 1, kind: input, shape index: {}]
  %s2 = inlined_call_operand.vmem [shape: f32[1,64], index: 2, kind: input, shape index: {}]
  %s3 = inlined_call_operand.vmem [shape: bf16[64,64], index: 3, kind: input, shape index: {}]
  %s4 = inlined_call_operand.vmem [shape: f32[1,64], index: 4, kind: input, shape index: {}]
  %s5 = inlined_call_operand.vmem [shape: bf16[64,16], index: 5, kind: input, shape index: {}]
  %s6 = inlined_call_operand.vmem [shape: f32[256,16], index: 6, kind: output, shape index: {}]
  %s7 = sld [smem:[#allocation0]]
  $region57: #{tpu_custom_call.1} parent=0
    _
  %s9 = ssub.s32 1, %s7
  %s10 = scalar_select 0, %s9, %s7
  loop: start=0, step=1, limit=4
  $region2: #{tpu_custom_call.1} parent=0 // loop_pre_header
    _
  $region3: #{tpu_custom_call.1} parent=0 // loop_header
    %s12 = sphi 0, %s16
    %p13 = scmp.ge.s32.totalorder %s12, 4
    %s22 = sphi 0, %s24
    %s25 = sphi 0, %s22
    %s26 = sphi 0, %s25
    %s42 = sphi 0, %s26
    %s46 = sphi 0, %s46
    %s48 = sphi 0, %s46
    %s49 = sphi 0, %s48
    %s63 = sphi 0, %s49
    %s67 = sphi 0, %s67
    %s69 = sphi 0, %s67
    %s70 = sphi 0, %s69
    %s84 = sphi 0, %s70
    %s88 = sphi 0, %s88
    %s90 = sphi 0, %s88
    %s91 = sphi 0, %s90
    %s105 = sphi 0, %s91
    %s109 = sphi 0, %s109
    %s111 = sphi 0, %s109
    %s112 = sphi 0, %s111
    %s126 = sphi 0, %s112
    %s130 = sphi 0, %s130
    %s132 = sphi 0, %s130
    %s133 = sphi 0, %s132
    %s147 = sphi 0, %s133
    %s153 = sphi 0, %s155
    %s156 = sphi 0, %s153
    %s157 = sphi 0, %s156
    %s173 = sphi 0, %s157
  $region4: #{tpu_custom_call.1} parent=0 // loop_header_branch
    %15 = sbr.rel (%p13) target = $region8
  $region5: #{tpu_custom_call.1} parent=0 // loop_body
    %s17 = ssub.s32 %s12, 1
    %s18 = ssub.s32 %s12, 2
    %s19 = sadd.s32 %s12, 1
    %s20 = ssub.s32 %s12, %s19
    %p21 = scmp.eq.s32.totalorder %s20, 0
    %s23 = sadd.s32 %s22, 1
    %s24 = scalar_select %p21, %s22, %s23
    %p27 = pneg %p21
    %p28 = scmp.eq.s32.totalorder %s12, 1
    %p29 = por %p27, %p28
    %p30 = scmp.ne.s32.totalorder %s22, %s25
    %p31 = scmp.eq.s32.totalorder %s12, 0
    %p32 = por %p30, %p31
    %p33 = scmp.ne.s32.totalorder %s22, %s25
    %p34 = scmp.eq.s32.totalorder %s17, 1
    %p35 = por %p33, %p34
    %p36 = scmp.ne.s32.totalorder %s25, %s26
    %p37 = scmp.eq.s32.totalorder %s17, 0
    %p38 = por %p36, %p37
    %p39 = scmp.ne.s32.totalorder %s25, %s26
    %p40 = scmp.eq.s32.totalorder %s18, 1
    %p41 = por %p39, %p40
    %p43 = scmp.ne.s32.totalorder %s26, %s42
    %p44 = scmp.eq.s32.totalorder %s18, 0
    %p45 = por %p43, %p44
    %s47 = sadd.s32 %s46, 1
    %p50 = scmp.eq.s32.totalorder %s12, 1
    %p51 = scmp.ne.s32.totalorder %s46, %s48
    %p52 = scmp.eq.s32.totalorder %s12, 0
    %p53 = por %p51, %p52
    %p54 = scmp.ne.s32.totalorder %s46, %s48
    %p55 = scmp.eq.s32.totalorder %s17, 1
    %p56 = por %p54, %p55
    %p57 = scmp.ne.s32.totalorder %s48, %s49
    %p58 = scmp.eq.s32.totalorder %s17, 0
    %p59 = por %p57, %p58
    %p60 = scmp.ne.s32.totalorder %s48, %s49
    %p61 = scmp.eq.s32.totalorder %s18, 1
    %p62 = por %p60, %p61
    %p64 = scmp.ne.s32.totalorder %s49, %s63
    %p65 = scmp.eq.s32.totalorder %s18, 0
    %p66 = por %p64, %p65
    %s68 = sadd.s32 %s67, 1
    %p71 = scmp.eq.s32.totalorder %s12, 1
    %p72 = scmp.ne.s32.totalorder %s67, %s69
    %p73 = scmp.eq.s32.totalorder %s12, 0
    %p74 = por %p72, %p73
    %p75 = scmp.ne.s32.totalorder %s67, %s69
    %p76 = scmp.eq.s32.totalorder %s17, 1
    %p77 = por %p75, %p76
    %p78 = scmp.ne.s32.totalorder %s69, %s70
    %p79 = scmp.eq.s32.totalorder %s17, 0
    %p80 = por %p78, %p79
    %p81 = scmp.ne.s32.totalorder %s69, %s70
    %p82 = scmp.eq.s32.totalorder %s18, 1
    %p83 = por %p81, %p82
    %p85 = scmp.ne.s32.totalorder %s70, %s84
    %p86 = scmp.eq.s32.totalorder %s18, 0
    %p87 = por %p85, %p86
    %s89 = sadd.s32 %s88, 1
    %p92 = scmp.eq.s32.totalorder %s12, 1
    %p93 = scmp.ne.s32.totalorder %s88, %s90
    %p94 = scmp.eq.s32.totalorder %s12, 0
    %p95 = por %p93, %p94
    %p96 = scmp.ne.s32.totalorder %s88, %s90
    %p97 = scmp.eq.s32.totalorder %s17, 1
    %p98 = por %p96, %p97
    %p99 = scmp.ne.s32.totalorder %s90, %s91
    %p100 = scmp.eq.s32.totalorder %s17, 0
    %p101 = por %p99, %p100
    %p102 = scmp.ne.s32.totalorder %s90, %s91
    %p103 = scmp.eq.s32.totalorder %s18, 1
    %p104 = por %p102, %p103
    %p106 = scmp.ne.s32.totalorder %s91, %s105
    %p107 = scmp.eq.s32.totalorder %s18, 0
    %p108 = por %p106, %p107
    %s110 = sadd.s32 %s109, 1
    %p113 = scmp.eq.s32.totalorder %s12, 1
    %p114 = scmp.ne.s32.totalorder %s109, %s111
    %p115 = scmp.eq.s32.totalorder %s12, 0
    %p116 = por %p114, %p115
    %p117 = scmp.ne.s32.totalorder %s109, %s111
    %p118 = scmp.eq.s32.totalorder %s17, 1
    %p119 = por %p117, %p118
    %p120 = scmp.ne.s32.totalorder %s111, %s112
    %p121 = scmp.eq.s32.totalorder %s17, 0
    %p122 = por %p120, %p121
    %p123 = scmp.ne.s32.totalorder %s111, %s112
    %p124 = scmp.eq.s32.totalorder %s18, 1
    %p125 = por %p123, %p124
    %p127 = scmp.ne.s32.totalorder %s112, %s126
    %p128 = scmp.eq.s32.totalorder %s18, 0
    %p129 = por %p127, %p128
    %s131 = sadd.s32 %s130, 1
    %p134 = scmp.eq.s32.totalorder %s12, 1
    %p135 = scmp.ne.s32.totalorder %s130, %s132
    %p136 = scmp.eq.s32.totalorder %s12, 0
    %p137 = por %p135, %p136
    %p138 = scmp.ne.s32.totalorder %s130, %s132
    %p139 = scmp.eq.s32.totalorder %s17, 1
    %p140 = por %p138, %p139
    %p141 = scmp.ne.s32.totalorder %s132, %s133
    %p142 = scmp.eq.s32.totalorder %s17, 0
    %p143 = por %p141, %p142
    %p144 = scmp.ne.s32.totalorder %s132, %s133
    %p145 = scmp.eq.s32.totalorder %s18, 1
    %p146 = por %p144, %p145
    %p148 = scmp.ne.s32.totalorder %s133, %s147
    %p149 = scmp.eq.s32.totalorder %s18, 0
    %p150 = por %p148, %p149
    %s151 = ssub.s32 %s12, %s19
    %p152 = scmp.eq.s32.totalorder %s151, 0
    %s154 = sadd.s32 %s153, 1
    %s155 = scalar_select %p152, %s153, %s154
    %p158 = pneg %p152
    %p159 = scmp.eq.s32.totalorder %s12, 1
    %p160 = por %p158, %p159
    %p161 = scmp.ne.s32.totalorder %s153, %s156
    %p162 = scmp.eq.s32.totalorder %s12, 0
    %p163 = por %p161, %p162
    %p164 = scmp.ne.s32.totalorder %s153, %s156
    %p165 = scmp.eq.s32.totalorder %s17, 1
    %p166 = por %p164, %p165
    %p167 = scmp.ne.s32.totalorder %s156, %s157
    %p168 = scmp.eq.s32.totalorder %s17, 0
    %p169 = por %p167, %p168
    %p170 = scmp.ne.s32.totalorder %s156, %s157
    %p171 = scmp.eq.s32.totalorder %s18, 1
    %p172 = por %p170, %p171
    %p174 = scmp.ne.s32.totalorder %s157, %s173
    %p175 = scmp.eq.s32.totalorder %s18, 0
    %p176 = por %p174, %p175
    %p177 = scmp.le.s32.totalorder 1, %s12
    %p178 = scmp.lt.s32.totalorder %s12, 3
    %p179 = pnand %p177, %p178
    %p180 = pneg %p179
    // Predicated region
    $region9: #{tpu_custom_call.1} parent=5 // pred_check
      _
    $region10: #{tpu_custom_call.1} parent=5 // pred_check_branch
      %182 = sbr.rel (%p179) target = $region12
    $region11: #{tpu_custom_call.1} parent=5 // pred_region
      %s183 = ssub.s32 %s12, 1
      // Predicated region
      $region13: #{tpu_custom_call.1} parent=11 // pred_check
        %p184 = pneg %p59
      $region14: #{tpu_custom_call.1} parent=11 // pred_check_branch
        %186 = sbr.rel (%p184) target = $region16
      $region15: #{tpu_custom_call.1} parent=11 // pred_region
        _
      $region16: #{tpu_custom_call.1} parent=11 // pred_fallthru
        _
      // Predicated region
      $region17: #{tpu_custom_call.1} parent=11 // pred_check
        %p187 = pneg %p80
      $region18: #{tpu_custom_call.1} parent=11 // pred_check_branch
        %189 = sbr.rel (%p187) target = $region20
      $region19: #{tpu_custom_call.1} parent=11 // pred_region
        _
      $region20: #{tpu_custom_call.1} parent=11 // pred_fallthru
        _
      // Predicated region
      $region21: #{tpu_custom_call.1} parent=11 // pred_check
        %p190 = pneg %p101
      $region22: #{tpu_custom_call.1} parent=11 // pred_check_branch
        %192 = sbr.rel (%p190) target = $region24
      $region23: #{tpu_custom_call.1} parent=11 // pred_region
        _
      $region24: #{tpu_custom_call.1} parent=11 // pred_fallthru
        _
      // Predicated region
      $region25: #{tpu_custom_call.1} parent=11 // pred_check
        %p193 = pneg %p122
      $region26: #{tpu_custom_call.1} parent=11 // pred_check_branch
        %195 = sbr.rel (%p193) target = $region28
      $region27: #{tpu_custom_call.1} parent=11 // pred_region
        _
      $region28: #{tpu_custom_call.1} parent=11 // pred_fallthru
        _
      // Predicated region
      $region29: #{tpu_custom_call.1} parent=11 // pred_check
        %p196 = pneg %p143
      $region30: #{tpu_custom_call.1} parent=11 // pred_check_branch
        %198 = sbr.rel (%p196) target = $region32
      $region31: #{tpu_custom_call.1} parent=11 // pred_region
        _
      $region32: #{tpu_custom_call.1} parent=11 // pred_fallthru
        _
    $region12: #{tpu_custom_call.1} parent=5 // pred_fallthru
      _
    %p199 = scmp.lt.s32.totalorder %s12, 2
    // Predicated region
    $region33: #{tpu_custom_call.1} parent=5 // pred_check
      %p200 = pneg %p199
    $region34: #{tpu_custom_call.1} parent=5 // pred_check_branch
      %202 = sbr.rel (%p200) target = $region36
    $region35: #{tpu_custom_call.1} parent=5 // pred_region
      // Predicated region
      $region37: #{tpu_custom_call.1} parent=35 // pred_check
        %p203 = pneg %p32
      $region38: #{tpu_custom_call.1} parent=35 // pred_check_branch
        %205 = sbr.rel (%p203) target = $region40
      $region39: #{tpu_custom_call.1} parent=35 // pred_region
        %s206 = smul.u32 16, %s12
        %p207 = scmp.lt.s32.totalorder %s206, 31
        %s208 = scalar_select %p207, %s206, 31
        %s209 = smul.addr %s208, 8
        %s210 = scalar_lea.vmem %s0, %s209
        %s211 = smul.u32 16, %s12
      $region40: #{tpu_custom_call.1} parent=35 // pred_fallthru
        _
    $region36: #{tpu_custom_call.1} parent=5 // pred_fallthru
      _
    %p212 = scmp.le.s32.totalorder 1, %s12
    %p213 = scmp.lt.s32.totalorder %s12, 3
    %p214 = pnand %p212, %p213
    %p215 = pneg %p214
    // Predicated region
    $region41: #{tpu_custom_call.1} parent=5 // pred_check
      _
    $region42: #{tpu_custom_call.1} parent=5 // pred_check_branch
      %217 = sbr.rel (%p214) target = $region44
    $region43: #{tpu_custom_call.1} parent=5 // pred_region
      %s218 = ssub.s32 %s12, 1
      %s219 = smul.u32 16, %s17
      %p220 = scmp.lt.s32.totalorder %s219, 31
      %s221 = scalar_select %p220, %s219, 31
      %s222 = smul.addr %s221, 8
      %s223 = scalar_lea.vmem %s0, %s222
      %p224 = pneg %p38
      %p225 = pneg %p35
      %p226 = pneg %p59
      %p227 = pneg %p56
      %p228 = pneg %p80
      %p229 = pneg %p77
      %p230 = pneg %p101
      %p231 = pneg %p98
      %p232 = pneg %p122
      %p233 = pneg %p119
      %p234 = pneg %p143
      %p235 = pneg %p140
      %p236 = pneg %p169
      %p237 = pneg %p166
      %s238 = smul.u32 16, %s17
      %p239 = scmp.lt.s32.totalorder %s238, 31
      %s240 = scalar_select %p239, %s238, 31
      %s241 = smul.addr %s240, 8
      %s242 = scalar_lea.vmem %s6, %s241
      %s243 = smul.u32 16, %s17
      %p244 = scmp.lt.s32.totalorder %s243, 31
      %s245 = scalar_select %p244, %s243, 31
      %s246 = smul.addr %s245, 8
      %s247 = scalar_lea.vmem %s0, %s246
      %s248 = smul.u32 16, %s17
      %s249 = smul.u32 16, %s17
      %p250 = scmp.lt.s32.totalorder %s249, 31
      %s251 = scalar_select %p250, %s249, 31
      %s252 = smul.addr %s251, 8
      %s253 = scalar_lea.vmem %s6, %s252
      %s254 = smul.u32 16, %s17
      %v256 = vld [vmem:[%s247] sm:$0xff]
      %v257 = vld [vmem:[%s247 + $0x8] sm:$0xff]
      %v258 = vld [vmem:[%s247 + $0x10] sm:$0xff]
      %v259 = vld [vmem:[%s247 + $0x18] sm:$0xff]
      %v260 = vld [vmem:[%s247 + $0x20] sm:$0xff]
      %v261 = vld [vmem:[%s247 + $0x28] sm:$0xff]
      %v262 = vld [vmem:[%s247 + $0x30] sm:$0xff]
      %v263 = vld [vmem:[%s247 + $0x38] sm:$0xff]
      %v264 = vld [vmem:[%s247 + $0x40] sm:$0xff]
      %v265 = vld [vmem:[%s247 + $0x48] sm:$0xff]
      %v266 = vld [vmem:[%s247 + $0x50] sm:$0xff]
      %v267 = vld [vmem:[%s247 + $0x58] sm:$0xff]
      %v268 = vld [vmem:[%s247 + $0x60] sm:$0xff]
      %v269 = vld [vmem:[%s247 + $0x68] sm:$0xff]
      %v270 = vld [vmem:[%s247 + $0x70] sm:$0xff]
      %v271 = vld [vmem:[%s247 + $0x78] sm:$0xff]
      %v272 = vpack.c.bf16 %v257, %v256
      %v273 = vpack.c.bf16 %v259, %v258
      %v274 = vpack.c.bf16 %v261, %v260
      %v275 = vpack.c.bf16 %v263, %v262
      %v276 = vpack.c.bf16 %v265, %v264
      %v277 = vpack.c.bf16 %v267, %v266
      %v278 = vpack.c.bf16 %v269, %v268
      %v279 = vpack.c.bf16 %v271, %v270
      %v280 = vld [vmem:[%s1] sm:$0xf]
      %v281 = vld [vmem:[%s1 + $0x4] sm:$0xf]
      %v282 = vld [vmem:[%s1 + $0x8] sm:$0xf]
      %v283 = vld [vmem:[%s1 + $0xc] sm:$0xf]
      %v284 = vld [vmem:[%s2] sm:$0x1]
      %v286 = vlaneseq
      %v287 = vshrl.u32 %v286, 7
      %v288 = vsub.s32 0, %v287
      %v289 = vrot.slane %v284, %v288
      %v295 = vunpack.c.l.b16 %v280
      %v296 = vunpack.c.l.b16 %v281
      %v297 = vunpack.c.l.b16 %v282
      %v298 = vunpack.c.l.b16 %v283
      %v299 = vpack.c.b16 %v296, %v295
      %v300 = vpack.c.b16 %v298, %v297
      %vm303 = vcmask 261120
      %v305 = vsel %vm303, %v272, 0
      %v308 = vsel %vm303, %v273, 0
      %v311 = vsel %vm303, %v274, 0
      %v314 = vsel %vm303, %v275, 0
      %v317 = vsel %vm303, %v276, 0
      %v320 = vsel %vm303, %v277, 0
      %v323 = vsel %vm303, %v278, 0
      %v326 = vsel %vm303, %v279, 0
      %328 = vmatprep.subr.bf16.mxu0 0
      %329 = vmatpush1.bf16.msra.mxu0 %v299
      %330 = vmatprep.subr.bf16.mxu0 0
      %331 = vmatpush1.bf16.msra.mxu0 %v300
      %332 = vmatprep.subr.bf16.mxu0 0
      %333 = vmatpush1.bf16.msra.mxu0 0
      %334 = vmatprep.subr.bf16.mxu0 0
      %335 = vmatpush1.bf16.msra.mxu0 0
      %336 = vmatprep.subr.bf16.mxu0 0
      %337 = vmatpush1.bf16.msra.mxu0 0
      %338 = vmatprep.subr.bf16.mxu0 0
      %339 = vmatpush1.bf16.msra.mxu0 0
      %340 = vmatprep.subr.bf16.mxu0 0
      %341 = vmatpush1.bf16.msra.mxu0 0
      %342 = vmatprep.subr.bf16.mxu0 0
      %343 = vmatpush1.bf16.msra.mxu0 0
      %344 = vmatprep.subr.bf16.mxu0 0
      %345 = vmatpush1.bf16.msra.mxu0 0
      %346 = vmatprep.subr.bf16.mxu0 0
      %347 = vmatpush1.bf16.msra.mxu0 0
      %348 = vmatprep.subr.bf16.mxu0 0
      %349 = vmatpush1.bf16.msra.mxu0 0
      %350 = vmatprep.subr.bf16.mxu0 0
      %351 = vmatpush1.bf16.msra.mxu0 0
      %352 = vmatprep.subr.bf16.mxu0 0
      %353 = vmatpush1.bf16.msra.mxu0 0
      %354 = vmatprep.subr.bf16.mxu0 0
      %355 = vmatpush1.bf16.msra.mxu0 0
      %356 = vmatprep.subr.bf16.mxu0 0
      %357 = vmatpush1.bf16.msra.mxu0 0
      %358 = vmatprep.subr.bf16.mxu0 0
      %359 = vmatpush1.bf16.msra.mxu0 0
      %360 = vmatprep.mubr.bf16.mxu0 0
      %361 = vmatmul.mubr.bf16.gmra.mrb[0].mxu0 %v305
      %v362 = vpop.f32.mrb[0].mxu0
      %v363 = vadd.f32 %v289, %v362
      %v364 = vpop.f32.mrb[0].mxu0
      %v365 = vpop.f32.mrb[0].mxu0
      %v366 = vadd.f32 %v289, %v365
      %v367 = vpop.f32.mrb[0].mxu0
      %368 = vmatprep.mubr.bf16.mxu0 0
      %369 = vmatmul.mubr.bf16.gmra.mrb[0].mxu0 %v308
      %v370 = vpop.f32.mrb[0].mxu0
      %v371 = vadd.f32 %v289, %v370
      %v372 = vpop.f32.mrb[0].mxu0
      %v373 = vpop.f32.mrb[0].mxu0
      %v374 = vadd.f32 %v289, %v373
      %v375 = vpop.f32.mrb[0].mxu0
      %376 = vmatprep.mubr.bf16.mxu0 0
      %377 = vmatmul.mubr.bf16.gmra.mrb[0].mxu0 %v311
      %v378 = vpop.f32.mrb[0].mxu0
      %v379 = vadd.f32 %v289, %v378
      %v380 = vpop.f32.mrb[0].mxu0
      %v381 = vpop.f32.mrb[0].mxu0
      %v382 = vadd.f32 %v289, %v381
      %v383 = vpop.f32.mrb[0].mxu0
      %384 = vmatprep.mubr.bf16.mxu0 0
      %385 = vmatmul.mubr.bf16.gmra.mrb[0].mxu0 %v314
      %v386 = vpop.f32.mrb[0].mxu0
      %v387 = vadd.f32 %v289, %v386
      %v388 = vpop.f32.mrb[0].mxu0
      %v389 = vpop.f32.mrb[0].mxu0
      %v390 = vadd.f32 %v289, %v389
      %v391 = vpop.f32.mrb[0].mxu0
      %392 = vmatprep.mubr.bf16.mxu0 0
      %393 = vmatmul.mubr.bf16.gmra.mrb[0].mxu0 %v317
      %v394 = vpop.f32.mrb[0].mxu0
      %v395 = vadd.f32 %v289, %v394
      %v396 = vpop.f32.mrb[0].mxu0
      %v397 = vpop.f32.mrb[0].mxu0
      %v398 = vadd.f32 %v289, %v397
      %v399 = vpop.f32.mrb[0].mxu0
      %400 = vmatprep.mubr.bf16.mxu0 0
      %401 = vmatmul.mubr.bf16.gmra.mrb[0].mxu0 %v320
      %v402 = vpop.f32.mrb[0].mxu0
      %v403 = vadd.f32 %v289, %v402
      %v404 = vpop.f32.mrb[0].mxu0
      %v405 = vpop.f32.mrb[0].mxu0
      %v406 = vadd.f32 %v289, %v405
      %v407 = vpop.f32.mrb[0].mxu0
      %408 = vmatprep.mubr.bf16.mxu0 0
      %409 = vmatmul.mubr.bf16.gmra.mrb[0].mxu0 %v323
      %v410 = vpop.f32.mrb[0].mxu0
      %v411 = vadd.f32 %v289, %v410
      %v412 = vpop.f32.mrb[0].mxu0
      %v413 = vpop.f32.mrb[0].mxu0
      %v414 = vadd.f32 %v289, %v413
      %v415 = vpop.f32.mrb[0].mxu0
      %416 = vmatprep.mubr.bf16.mxu0 0
      %417 = vmatmul.mubr.bf16.gmra.mrb[0].mxu0 %v326
      %v418 = vpop.f32.mrb[0].mxu0
      %v419 = vadd.f32 %v289, %v418
      %v420 = vpop.f32.mrb[0].mxu0
      %v421 = vpop.f32.mrb[0].mxu0
      %v422 = vadd.f32 %v289, %v421
      %v423 = vpop.f32.mrb[0].mxu0
      %424 = vdwg.mxu0
      %v425 = vmax.f32 %v363, 0.0
      %v426 = vmax.f32 %v366, 0.0
      %v427 = vmax.f32 %v371, 0.0
      %v428 = vmax.f32 %v374, 0.0
      %v429 = vmax.f32 %v379, 0.0
      %v430 = vmax.f32 %v382, 0.0
      %v431 = vmax.f32 %v387, 0.0
      %v432 = vmax.f32 %v390, 0.0
      %v433 = vmax.f32 %v395, 0.0
      %v434 = vmax.f32 %v398, 0.0
      %v435 = vmax.f32 %v403, 0.0
      %v436 = vmax.f32 %v406, 0.0
      %v437 = vmax.f32 %v411, 0.0
      %v438 = vmax.f32 %v414, 0.0
      %v439 = vmax.f32 %v419, 0.0
      %v440 = vmax.f32 %v422, 0.0
      %v441 = vpack.c.bf16 %v426, %v425
      %v442 = vpack.c.bf16 %v428, %v427
      %v443 = vpack.c.bf16 %v430, %v429
      %v444 = vpack.c.bf16 %v432, %v431
      %v445 = vpack.c.bf16 %v434, %v433
      %v446 = vpack.c.bf16 %v436, %v435
      %v447 = vpack.c.bf16 %v438, %v437
      %v448 = vpack.c.bf16 %v440, %v439
      %v449 = vld [vmem:[%s3] sm:$0xf]
      %v450 = vld [vmem:[%s3 + $0x4] sm:$0xf]
      %v451 = vld [vmem:[%s3 + $0x8] sm:$0xf]
      %v452 = vld [vmem:[%s3 + $0xc] sm:$0xf]
      %v453 = vld [vmem:[%s3 + $0x10] sm:$0xf]
      %v454 = vld [vmem:[%s3 + $0x14] sm:$0xf]
      %v455 = vld [vmem:[%s3 + $0x18] sm:$0xf]
      %v456 = vld [vmem:[%s3 + $0x1c] sm:$0xf]
      %v457 = vld [vmem:[%s4] sm:$0x1]
      %v459 = vlaneseq
      %v460 = vshrl.u32 %v459, 7
      %v461 = vsub.s32 0, %v460
      %v462 = vrot.slane %v457, %v461
      %v472 = vunpack.c.l.b16 %v449
      %v473 = vunpack.c.l.b16 %v450
      %v474 = vunpack.c.l.b16 %v451
      %v475 = vunpack.c.l.b16 %v452
      %v476 = vunpack.c.l.b16 %v453
      %v477 = vunpack.c.l.b16 %v454
      %v478 = vunpack.c.l.b16 %v455
      %v479 = vunpack.c.l.b16 %v456
      %v480 = vpack.c.b16 %v473, %v472
      %v481 = vpack.c.b16 %v475, %v474
      %v482 = vpack.c.b16 %v477, %v476
      %v483 = vpack.c.b16 %v479, %v478
      %vm488 = vcmask 523264
      %v490 = vsel %vm488, %v441, 0
      %v493 = vsel %vm488, %v442, 0
      %v496 = vsel %vm488, %v443, 0
      %v499 = vsel %vm488, %v444, 0
      %v502 = vsel %vm488, %v445, 0
      %v505 = vsel %vm488, %v446, 0
      %v508 = vsel %vm488, %v447, 0
      %v511 = vsel %vm488, %v448, 0
      %513 = vmatprep.subr.bf16.mxu0 0
      %514 = vmatpush1.bf16.msra.mxu0 %v480
      %515 = vmatprep.subr.bf16.mxu0 0
      %516 = vmatpush1.bf16.msra.mxu0 %v481
      %517 = vmatprep.subr.bf16.mxu0 0
      %518 = vmatpush1.bf16.msra.mxu0 %v482
      %519 = vmatprep.subr.bf16.mxu0 0
      %520 = vmatpush1.bf16.msra.mxu0 %v483
      %521 = vmatprep.subr.bf16.mxu0 0
      %522 = vmatpush1.bf16.msra.mxu0 0
      %523 = vmatprep.subr.bf16.mxu0 0
      %524 = vmatpush1.bf16.msra.mxu0 0
      %525 = vmatprep.subr.bf16.mxu0 0
      %526 = vmatpush1.bf16.msra.mxu0 0
      %527 = vmatprep.subr.bf16.mxu0 0
      %528 = vmatpush1.bf16.msra.mxu0 0
      %529 = vmatprep.subr.bf16.mxu0 0
      %530 = vmatpush1.bf16.msra.mxu0 0
      %531 = vmatprep.subr.bf16.mxu0 0
      %532 = vmatpush1.bf16.msra.mxu0 0
      %533 = vmatprep.subr.bf16.mxu0 0
      %534 = vmatpush1.bf16.msra.mxu0 0
      %535 = vmatprep.subr.bf16.mxu0 0
      %536 = vmatpush1.bf16.msra.mxu0 0
      %537 = vmatprep.subr.bf16.mxu0 0
      %538 = vmatpush1.bf16.msra.mxu0 0
      %539 = vmatprep.subr.bf16.mxu0 0
      %540 = vmatpush1.bf16.msra.mxu0 0
      %541 = vmatprep.subr.bf16.mxu0 0
      %542 = vmatpush1.bf16.msra.mxu0 0
      %543 = vmatprep.subr.bf16.mxu0 0
      %544 = vmatpush1.bf16.msra.mxu0 0
      %545 = vmatprep.mubr.bf16.mxu0 0
      %546 = vmatmul.mubr.bf16.gmra.mrb[0].mxu0 %v490
      %v547 = vpop.f32.mrb[0].mxu0
      %v548 = vadd.f32 %v462, %v547
      %v549 = vpop.f32.mrb[0].mxu0
      %v550 = vpop.f32.mrb[0].mxu0
      %v551 = vadd.f32 %v462, %v550
      %v552 = vpop.f32.mrb[0].mxu0
      %553 = vmatprep.mubr.bf16.mxu0 0
      %554 = vmatmul.mubr.bf16.gmra.mrb[0].mxu0 %v493
      %v555 = vpop.f32.mrb[0].mxu0
      %v556 = vadd.f32 %v462, %v555
      %v557 = vpop.f32.mrb[0].mxu0
      %v558 = vpop.f32.mrb[0].mxu0
      %v559 = vadd.f32 %v462, %v558
      %v560 = vpop.f32.mrb[0].mxu0
      %561 = vmatprep.mubr.bf16.mxu0 0
      %562 = vmatmul.mubr.bf16.gmra.mrb[0].mxu0 %v496
      %v563 = vpop.f32.mrb[0].mxu0
      %v564 = vadd.f32 %v462, %v563
      %v565 = vpop.f32.mrb[0].mxu0
      %v566 = vpop.f32.mrb[0].mxu0
      %v567 = vadd.f32 %v462, %v566
      %v568 = vpop.f32.mrb[0].mxu0
      %569 = vmatprep.mubr.bf16.mxu0 0
      %570 = vmatmul.mubr.bf16.gmra.mrb[0].mxu0 %v499
      %v571 = vpop.f32.mrb[0].mxu0
      %v572 = vadd.f32 %v462, %v571
      %v573 = vpop.f32.mrb[0].mxu0
      %v574 = vpop.f32.mrb[0].mxu0
      %v575 = vadd.f32 %v462, %v574
      %v576 = vpop.f32.mrb[0].mxu0
      %577 = vmatprep.mubr.bf16.mxu0 0
      %578 = vmatmul.mubr.bf16.gmra.mrb[0].mxu0 %v502
      %v579 = vpop.f32.mrb[0].mxu0
      %v580 = vadd.f32 %v462, %v579
      %v581 = vpop.f32.mrb[0].mxu0
      %v582 = vpop.f32.mrb[0].mxu0
      %v583 = vadd.f32 %v462, %v582
      %v584 = vpop.f32.mrb[0].mxu0
      %585 = vmatprep.mubr.bf16.mxu0 0
      %586 = vmatmul.mubr.bf16.gmra.mrb[0].mxu0 %v505
      %v587 = vpop.f32.mrb[0].mxu0
      %v588 = vadd.f32 %v462, %v587
      %v589 = vpop.f32.mrb[0].mxu0
      %v590 = vpop.f32.mrb[0].mxu0
      %v591 = vadd.f32 %v462, %v590
      %v592 = vpop.f32.mrb[0].mxu0
      %593 = vmatprep.mubr.bf16.mxu0 0
      %594 = vmatmul.mubr.bf16.gmra.mrb[0].mxu0 %v508
      %v595 = vpop.f32.mrb[0].mxu0
      %v596 = vadd.f32 %v462, %v595
      %v597 = vpop.f32.mrb[0].mxu0
      %v598 = vpop.f32.mrb[0].mxu0
      %v599 = vadd.f32 %v462, %v598
      %v600 = vpop.f32.mrb[0].mxu0
      %601 = vmatprep.mubr.bf16.mxu0 0
      %602 = vmatmul.mubr.bf16.gmra.mrb[0].mxu0 %v511
      %v603 = vpop.f32.mrb[0].mxu0
      %v604 = vadd.f32 %v462, %v603
      %v605 = vpop.f32.mrb[0].mxu0
      %v606 = vpop.f32.mrb[0].mxu0
      %v607 = vadd.f32 %v462, %v606
      %v608 = vpop.f32.mrb[0].mxu0
      %609 = vdwg.mxu0
      %v610 = vmax.f32 %v548, 0.0
      %v611 = vmax.f32 %v551, 0.0
      %v612 = vmax.f32 %v556, 0.0
      %v613 = vmax.f32 %v559, 0.0
      %v614 = vmax.f32 %v564, 0.0
      %v615 = vmax.f32 %v567, 0.0
      %v616 = vmax.f32 %v572, 0.0
      %v617 = vmax.f32 %v575, 0.0
      %v618 = vmax.f32 %v580, 0.0
      %v619 = vmax.f32 %v583, 0.0
      %v620 = vmax.f32 %v588, 0.0
      %v621 = vmax.f32 %v591, 0.0
      %v622 = vmax.f32 %v596, 0.0
      %v623 = vmax.f32 %v599, 0.0
      %v624 = vmax.f32 %v604, 0.0
      %v625 = vmax.f32 %v607, 0.0
      %v626 = vpack.c.bf16 %v611, %v610
      %v627 = vpack.c.bf16 %v613, %v612
      %v628 = vpack.c.bf16 %v615, %v614
      %v629 = vpack.c.bf16 %v617, %v616
      %v630 = vpack.c.bf16 %v619, %v618
      %v631 = vpack.c.bf16 %v621, %v620
      %v632 = vpack.c.bf16 %v623, %v622
      %v633 = vpack.c.bf16 %v625, %v624
      %v634 = vld [vmem:[%s5] sm:$0xf]
      %v635 = vld [vmem:[%s5 + $0x4] sm:$0xf]
      %v636 = vld [vmem:[%s5 + $0x8] sm:$0xf]
      %v637 = vld [vmem:[%s5 + $0xc] sm:$0xf]
      %v638 = vld [vmem:[%s5 + $0x10] sm:$0xf]
      %v639 = vld [vmem:[%s5 + $0x14] sm:$0xf]
      %v640 = vld [vmem:[%s5 + $0x18] sm:$0xf]
      %v641 = vld [vmem:[%s5 + $0x1c] sm:$0xf]
      %v650 = vunpack.c.l.b16 %v634
      %v651 = vunpack.c.l.b16 %v635
      %v652 = vunpack.c.l.b16 %v636
      %v653 = vunpack.c.l.b16 %v637
      %v654 = vunpack.c.l.b16 %v638
      %v655 = vunpack.c.l.b16 %v639
      %v656 = vunpack.c.l.b16 %v640
      %v657 = vunpack.c.l.b16 %v641
      %v658 = vpack.c.b16 %v651, %v650
      %v659 = vpack.c.b16 %v653, %v652
      %v660 = vpack.c.b16 %v655, %v654
      %v661 = vpack.c.b16 %v657, %v656
      %v667 = vsel %vm488, %v626, 0
      %v670 = vsel %vm488, %v627, 0
      %v673 = vsel %vm488, %v628, 0
      %v676 = vsel %vm488, %v629, 0
      %v679 = vsel %vm488, %v630, 0
      %v682 = vsel %vm488, %v631, 0
      %v685 = vsel %vm488, %v632, 0
      %v688 = vsel %vm488, %v633, 0
      %690 = vmatprep.subr.bf16.mxu0 0
      %691 = vmatpush1.bf16.msra.mxu0 %v658
      %692 = vmatprep.subr.bf16.mxu0 0
      %693 = vmatpush1.bf16.msra.mxu0 %v659
      %694 = vmatprep.subr.bf16.mxu0 0
      %695 = vmatpush1.bf16.msra.mxu0 %v660
      %696 = vmatprep.subr.bf16.mxu0 0
      %697 = vmatpush1.bf16.msra.mxu0 %v661
      %698 = vmatprep.subr.bf16.mxu0 0
      %699 = vmatpush1.bf16.msra.mxu0 0
      %700 = vmatprep.subr.bf16.mxu0 0
      %701 = vmatpush1.bf16.msra.mxu0 0
      %702 = vmatprep.subr.bf16.mxu0 0
      %703 = vmatpush1.bf16.msra.mxu0 0
      %704 = vmatprep.subr.bf16.mxu0 0
      %705 = vmatpush1.bf16.msra.mxu0 0
      %706 = vmatprep.subr.bf16.mxu0 0
      %707 = vmatpush1.bf16.msra.mxu0 0
      %708 = vmatprep.subr.bf16.mxu0 0
      %709 = vmatpush1.bf16.msra.mxu0 0
      %710 = vmatprep.subr.bf16.mxu0 0
      %711 = vmatpush1.bf16.msra.mxu0 0
      %712 = vmatprep.subr.bf16.mxu0 0
      %713 = vmatpush1.bf16.msra.mxu0 0
      %714 = vmatprep.subr.bf16.mxu0 0
      %715 = vmatpush1.bf16.msra.mxu0 0
      %716 = vmatprep.subr.bf16.mxu0 0
      %717 = vmatpush1.bf16.msra.mxu0 0
      %718 = vmatprep.subr.bf16.mxu0 0
      %719 = vmatpush1.bf16.msra.mxu0 0
      %720 = vmatprep.subr.bf16.mxu0 0
      %721 = vmatpush1.bf16.msra.mxu0 0
      %722 = vmatprep.mubr.bf16.mxu0 0
      %723 = vmatmul.mubr.bf16.gmra.mrb[0].mxu0 %v667
      %v724 = vpop.f32.mrb[0].mxu0
      %v725 = vadd.f32 0.0, %v724
      %v726 = vpop.f32.mrb[0].mxu0
      %v727 = vpop.f32.mrb[0].mxu0
      %v728 = vadd.f32 0.0, %v727
      %v729 = vpop.f32.mrb[0].mxu0
      %730 = vmatprep.mubr.bf16.mxu0 0
      %731 = vmatmul.mubr.bf16.gmra.mrb[0].mxu0 %v670
      %v732 = vpop.f32.mrb[0].mxu0
      %v733 = vadd.f32 0.0, %v732
      %v734 = vpop.f32.mrb[0].mxu0
      %v735 = vpop.f32.mrb[0].mxu0
      %v736 = vadd.f32 0.0, %v735
      %v737 = vpop.f32.mrb[0].mxu0
      %738 = vmatprep.mubr.bf16.mxu0 0
      %739 = vmatmul.mubr.bf16.gmra.mrb[0].mxu0 %v673
      %v740 = vpop.f32.mrb[0].mxu0
      %v741 = vadd.f32 0.0, %v740
      %v742 = vpop.f32.mrb[0].mxu0
      %v743 = vpop.f32.mrb[0].mxu0
      %v744 = vadd.f32 0.0, %v743
      %v745 = vpop.f32.mrb[0].mxu0
      %746 = vmatprep.mubr.bf16.mxu0 0
      %747 = vmatmul.mubr.bf16.gmra.mrb[0].mxu0 %v676
      %v748 = vpop.f32.mrb[0].mxu0
      %v749 = vadd.f32 0.0, %v748
      %v750 = vpop.f32.mrb[0].mxu0
      %v751 = vpop.f32.mrb[0].mxu0
      %v752 = vadd.f32 0.0, %v751
      %v753 = vpop.f32.mrb[0].mxu0
      %754 = vmatprep.mubr.bf16.mxu0 0
      %755 = vmatmul.mubr.bf16.gmra.mrb[0].mxu0 %v679
      %v756 = vpop.f32.mrb[0].mxu0
      %v757 = vadd.f32 0.0, %v756
      %v758 = vpop.f32.mrb[0].mxu0
      %v759 = vpop.f32.mrb[0].mxu0
      %v760 = vadd.f32 0.0, %v759
      %v761 = vpop.f32.mrb[0].mxu0
      %762 = vmatprep.mubr.bf16.mxu0 0
      %763 = vmatmul.mubr.bf16.gmra.mrb[0].mxu0 %v682
      %v764 = vpop.f32.mrb[0].mxu0
      %v765 = vadd.f32 0.0, %v764
      %v766 = vpop.f32.mrb[0].mxu0
      %v767 = vpop.f32.mrb[0].mxu0
      %v768 = vadd.f32 0.0, %v767
      %v769 = vpop.f32.mrb[0].mxu0
      %770 = vmatprep.mubr.bf16.mxu0 0
      %771 = vmatmul.mubr.bf16.gmra.mrb[0].mxu0 %v685
      %v772 = vpop.f32.mrb[0].mxu0
      %v773 = vadd.f32 0.0, %v772
      %v774 = vpop.f32.mrb[0].mxu0
      %v775 = vpop.f32.mrb[0].mxu0
      %v776 = vadd.f32 0.0, %v775
      %v777 = vpop.f32.mrb[0].mxu0
      %778 = vmatprep.mubr.bf16.mxu0 0
      %779 = vmatmul.mubr.bf16.gmra.mrb[0].mxu0 %v688
      %v780 = vpop.f32.mrb[0].mxu0
      %v781 = vadd.f32 0.0, %v780
      %v782 = vpop.f32.mrb[0].mxu0
      %v783 = vpop.f32.mrb[0].mxu0
      %v784 = vadd.f32 0.0, %v783
      %v785 = vpop.f32.mrb[0].mxu0
      %786 = vdwg.mxu0
      %vm787 = vcmask 130048
      %788 = vst.msk [vmem:[%s253] sm:$0xff] %vm787, %v725
      %789 = vst.msk [vmem:[%s253 + $0x8] sm:$0xff] %vm787, %v728
      %790 = vst.msk [vmem:[%s253 + $0x10] sm:$0xff] %vm787, %v733
      %791 = vst.msk [vmem:[%s253 + $0x18] sm:$0xff] %vm787, %v736
      %792 = vst.msk [vmem:[%s253 + $0x20] sm:$0xff] %vm787, %v741
      %793 = vst.msk [vmem:[%s253 + $0x28] sm:$0xff] %vm787, %v744
      %794 = vst.msk [vmem:[%s253 + $0x30] sm:$0xff] %vm787, %v749
      %795 = vst.msk [vmem:[%s253 + $0x38] sm:$0xff] %vm787, %v752
      %796 = vst.msk [vmem:[%s253 + $0x40] sm:$0xff] %vm787, %v757
      %797 = vst.msk [vmem:[%s253 + $0x48] sm:$0xff] %vm787, %v760
      %798 = vst.msk [vmem:[%s253 + $0x50] sm:$0xff] %vm787, %v765
      %799 = vst.msk [vmem:[%s253 + $0x58] sm:$0xff] %vm787, %v768
      %800 = vst.msk [vmem:[%s253 + $0x60] sm:$0xff] %vm787, %v773
      %801 = vst.msk [vmem:[%s253 + $0x68] sm:$0xff] %vm787, %v776
      %802 = vst.msk [vmem:[%s253 + $0x70] sm:$0xff] %vm787, %v781
      %803 = vst.msk [vmem:[%s253 + $0x78] sm:$0xff] %vm787, %v784
      %s804 = smul.u32 16, %s17
      %p805 = scmp.lt.s32.totalorder %s804, 31
      %s806 = scalar_select %p805, %s804, 31
      %s807 = smul.addr %s806, 8
      %s808 = scalar_lea.vmem %s6, %s807
      // Predicated region
      $region45: #{tpu_custom_call.1} parent=43 // pred_check
        %p809 = pneg %p166
      $region46: #{tpu_custom_call.1} parent=43 // pred_check_branch
        %811 = sbr.rel (%p809) target = $region48
      $region47: #{tpu_custom_call.1} parent=43 // pred_region
        %s812 = smul.u32 16, %s17
      $region48: #{tpu_custom_call.1} parent=43 // pred_fallthru
        _
    $region44: #{tpu_custom_call.1} parent=5 // pred_fallthru
      _
    %p813 = scmp.le.s32.totalorder 2, %s12
    // Predicated region
    $region49: #{tpu_custom_call.1} parent=5 // pred_check
      %p814 = pneg %p813
    $region50: #{tpu_custom_call.1} parent=5 // pred_check_branch
      %816 = sbr.rel (%p814) target = $region52
    $region51: #{tpu_custom_call.1} parent=5 // pred_region
      %s817 = ssub.s32 %s12, 2
      // Predicated region
      $region53: #{tpu_custom_call.1} parent=51 // pred_check
        %p818 = pneg %p172
      $region54: #{tpu_custom_call.1} parent=51 // pred_check_branch
        %820 = sbr.rel (%p818) target = $region56
      $region55: #{tpu_custom_call.1} parent=51 // pred_region
        %s821 = smul.u32 16, %s18
        %p822 = scmp.lt.s32.totalorder %s821, 31
        %s823 = scalar_select %p822, %s821, 31
        %s824 = smul.addr %s823, 8
        %s825 = scalar_lea.vmem %s6, %s824
      $region56: #{tpu_custom_call.1} parent=51 // pred_fallthru
        _
    $region52: #{tpu_custom_call.1} parent=5 // pred_fallthru
      _
  $region6: #{tpu_custom_call.1} parent=0 // loop_footer
    %s16 = sadd.s32 1, %s12
  $region7: #{tpu_custom_call.1} parent=0 // loop_footer_branch
    %11 = sbr.rel target = $region3
  $region8: #{tpu_custom_call.1} parent=0 // loop_exit
    _

</llo_original>
